<compile_context>
chip_gen: v6e
topology: v6e:2x2x1
jax: 0.10.0
libtpu: 0.0.40
codegen_flags: <defaults>
</compile_context>

<pallas_src>
import functools

import jax
import jax.numpy as jnp
from jax.experimental import pallas as pl
from jax.experimental.pallas import tpu as pltpu


HIDDEN = 64                  # per-head hidden width (as in the PyTorch module)
FUSED_HIDDEN = 2 * HIDDEN    # fused actor||critic hidden width = 128 lanes (1 vreg)
OUT_PAD = 128                # lane-dense combined output width
DEFAULT_BLOCK_B = 4096       # batch tile (fits VMEM on v5e/v6e/v7x with 48 MiB limit)
NEG_BIG = -1.0e30            # additive softmax mask value (exp underflows to exactly 0)

# Row layout of the resident constants block.
_ROW_B1, _ROW_B2, _ROW_B3, _ROW_SMASK, _ROW_VMASK = 0, 1, 2, 3, 4
CONST_ROWS = 8               # padded to a full (8,128) f32 tile


def _round_up(n, m):
    return -(-n // m) * m


# ----------------------------------------------------------------------------
# Kernel
# ----------------------------------------------------------------------------
def _fused_actor_critic_kernel(x_ref, w1_ref, w2_ref, w3_ref, c_ref, out_ref):
    x = x_ref[...]                                            # (TB, obs) bf16

    b1 = c_ref[_ROW_B1:_ROW_B1 + 1, :]                        # (1, 128) f32
    b2 = c_ref[_ROW_B2:_ROW_B2 + 1, :]
    b3 = c_ref[_ROW_B3:_ROW_B3 + 1, :]
    softmax_mask = c_ref[_ROW_SMASK:_ROW_SMASK + 1, :]        # 0 on logit lanes, -1e30 else
    value_mask = c_ref[_ROW_VMASK:_ROW_VMASK + 1, :]          # 1 on the value lane only

    # Layer 1 + 2: fused actor (lanes 0..63) and critic (lanes 64..127) hiddens.
    # bf16 operands, f32 MXU accumulation.
    h = jnp.dot(x, w1_ref[...], preferred_element_type=jnp.float32) + b1
    h = jnp.maximum(h, 0.0).astype(w2_ref.dtype)
    h = jnp.dot(h, w2_ref[...], preferred_element_type=jnp.float32) + b2
    h = jnp.maximum(h, 0.0).astype(w3_ref.dtype)

    # Layer 3: lanes 0..act-1 = actor logits, lane act = critic value, rest = 0.
    z = jnp.dot(h, w3_ref[...], preferred_element_type=jnp.float32) + b3

    # Softmax over the actor lanes only (resident additive mask, exact division).
    logits = z + softmax_mask
    m = jnp.max(logits, axis=-1, keepdims=True)
    e = jnp.exp(logits - m)                                   # exactly 0 on masked lanes
    denom = jnp.sum(e, axis=-1, keepdims=True)
    probs = e / denom                                         # exact: rows sum to 1

    # Lane-dense combined store: probs | value | zeros (bf16 slab, unmasked vst).
    out_ref[...] = (probs + z * value_mask).astype(out_ref.dtype)


# ----------------------------------------------------------------------------
# Wrappers
# ----------------------------------------------------------------------------
@functools.partial(jax.jit, static_argnames=("block_b", "out_dtype"))
def actor_critic_forward_slab(x, fused_params, *, block_b=DEFAULT_BLOCK_B,
                              out_dtype=jnp.bfloat16):
    """Primary API: returns the (B, 128) output slab (probs | value | zeros).

    Consumers should slice the slab lazily at the point of use (see
    probs_from_slab / value_from_slab) so XLA fuses the slice into the consumer
    instead of re-reading the slab from HBM.
    """
    w1, w2, w3, consts = fused_params
    x = x.astype(w1.dtype)                                    # bf16 activations
    B, obs = x.shape

    # Batch tile: large enough to amortize per-step pipeline overhead, capped so
    # the grid has >=2 steps for large B (v7x: 2 TensorCores) and stays well
    # inside VMEM. Multiple of 16 keeps bf16 (16,128) output tiles aligned.
    tb = min(block_b, max(16, _round_up(pl.cdiv(B, 2), 16)))
    grid = (pl.cdiv(B, tb),)

    return pl.pallas_call(
        _fused_actor_critic_kernel,
        grid=grid,
        in_specs=[
            pl.BlockSpec((tb, obs), lambda i: (i, 0)),                       # x tile
            pl.BlockSpec((obs, FUSED_HIDDEN), lambda i: (0, 0)),             # W1 (resident)
            pl.BlockSpec((FUSED_HIDDEN, FUSED_HIDDEN), lambda i: (0, 0)),    # W2 (resident)
            pl.BlockSpec((FUSED_HIDDEN, OUT_PAD), lambda i: (0, 0)),         # W3 (resident)
            pl.BlockSpec((CONST_ROWS, OUT_PAD), lambda i: (0, 0)),           # biases+masks
        ],
        out_specs=pl.BlockSpec((tb, OUT_PAD), lambda i: (i, 0)),
        out_shape=jax.ShapeDtypeStruct((B, OUT_PAD), out_dtype),
        compiler_params=pltpu.CompilerParams(
            dimension_semantics=("parallel",),        # megacore sharding on v7x
            vmem_limit_bytes=48 * 1024 * 1024,        # < v7x 64 MiB physical; ample on v5e/v6e
        ),
    )(x, w1, w2, w3, consts)


def probs_from_slab(slab, act_size):
    return slab[:, :act_size]


def value_from_slab(slab, act_size):
    return slab[:, act_size:act_size + 1]


def actor_critic_forward(x, fused_params, *, act_size, block_b=DEFAULT_BLOCK_B,
                         out_dtype=jnp.bfloat16):
    """Drop-in (probs, value) convenience wrapper matching the torch module.

    Prefer actor_critic_forward_slab + lazy slicing at the point of use for
    bandwidth-critical paths.
    """
    slab = actor_critic_forward_slab(x, fused_params, block_b=block_b,
                                     out_dtype=out_dtype)
    return probs_from_slab(slab, act_size), value_from_slab(slab, act_size)


# ----------------------------------------------------------------------------
# Parameter construction (PyTorch-style init) and one-time fusion
# ----------------------------------------------------------------------------
def _linear_params(key, in_features, out_features):
    """nn.Linear default init U(-1/sqrt(in), 1/sqrt(in)); weight pre-transposed to (in, out)."""
    kw, kb = jax.random.split(key)
    bound = 1.0 / jnp.sqrt(jnp.float32(in_features))
    w = jax.random.uniform(kw, (in_features, out_features), jnp.float32,
                           minval=-bound, maxval=bound)
    b = jax.random.uniform(kb, (1, out_features), jnp.float32,
                           minval=-bound, maxval=bound)
    return w, b


def init_actor_critic_params(key, obs_size, act_size):
    keys = jax.random.split(key, 6)
    aw1, ab1 = _linear_params(keys[0], obs_size, HIDDEN)
    aw2, ab2 = _linear_params(keys[1], HIDDEN, HIDDEN)
    aw3, ab3 = _linear_params(keys[2], HIDDEN, act_size)
    cw1, cb1 = _linear_params(keys[3], obs_size, HIDDEN)
    cw2, cb2 = _linear_params(keys[4], HIDDEN, HIDDEN)
    cw3, cb3 = _linear_params(keys[5], HIDDEN, 1)
    return (aw1, ab1, aw2, ab2, aw3, ab3,
            cw1, cb1, cw2, cb2, cw3, cb3)


def fuse_actor_critic_params(params, act_size, weight_dtype=jnp.bfloat16):
    """One-time (init-time) fusion of actor+critic into 3 lane-dense 128-wide bf16 layers
    plus a single resident f32 constants block (biases + softmax/value masks)."""
    assert act_size + 1 <= OUT_PAD
    (aw1, ab1, aw2, ab2, aw3, ab3,
     cw1, cb1, cw2, cb2, cw3, cb3) = params

    w1 = jnp.concatenate([aw1, cw1], axis=1).astype(weight_dtype)        # (obs, 128)

    w2 = jnp.zeros((FUSED_HIDDEN, FUSED_HIDDEN), jnp.float32)
    w2 = w2.at[:HIDDEN, :HIDDEN].set(aw2).at[HIDDEN:, HIDDEN:].set(cw2)
    w2 = w2.astype(weight_dtype)                                         # (128, 128)

    w3 = jnp.zeros((FUSED_HIDDEN, OUT_PAD), jnp.float32)
    w3 = w3.at[:HIDDEN, :act_size].set(aw3)
    w3 = w3.at[HIDDEN:, act_size:act_size + 1].set(cw3)
    w3 = w3.astype(weight_dtype)                                         # (128, 128)

    consts = jnp.zeros((CONST_ROWS, OUT_PAD), jnp.float32)
    consts = consts.at[_ROW_B1, :].set(jnp.concatenate([ab1, cb1], axis=1)[0])
    consts = consts.at[_ROW_B2, :].set(jnp.concatenate([ab2, cb2], axis=1)[0])
    consts = consts.at[_ROW_B3, :act_size].set(ab3[0])
    consts = consts.at[_ROW_B3, act_size].set(cb3[0, 0])
    consts = consts.at[_ROW_SMASK, act_size:].set(NEG_BIG)   # 0 on logit lanes, -1e30 else
    consts = consts.at[_ROW_VMASK, act_size].set(1.0)        # select the value lane

    return w1, w2, w3, consts


# ----------------------------------------------------------------------------
# Pure-JAX reference (unfused f32, mirrors the PyTorch module exactly)
# ----------------------------------------------------------------------------
def _reference_forward(x, params):
    (aw1, ab1, aw2, ab2, aw3, ab3,
     cw1, cb1, cw2, cb2, cw3, cb3) = params
    h = jax.nn.relu(x @ aw1 + ab1)
    h = jax.nn.relu(h @ aw2 + ab2)
    probs = jax.nn.softmax(h @ aw3 + ab3, axis=-1)
    c = jax.nn.relu(x @ cw1 + cb1)
    c = jax.nn.relu(c @ cw2 + cb2)
    value = c @ cw3 + cb3
    return probs, value


if __name__ == "__main__":
    obs_size = 8
    act_size = 4
    batch = 2

    key = jax.random.PRNGKey(0)
    k_params, k_x = jax.random.split(key)

    raw_params = init_actor_critic_params(k_params, obs_size, act_size)
    fused_params = fuse_actor_critic_params(raw_params, act_size)
    x = jax.random.normal(k_x, (batch, obs_size), jnp.float32)

    # Primary API: one lane-dense slab; slice lazily at the point of use.
    slab = actor_critic_forward_slab(x, fused_params)
    jax.block_until_ready(slab)

    probs = probs_from_slab(slab, act_size).astype(jnp.float32)
    value = value_from_slab(slab, act_size).astype(jnp.float32)

    # Sanity check against a plain-JAX f32 reference.
    ref_probs, ref_value = _reference_forward(x, raw_params)
    assert probs.shape == (batch, act_size)
    assert value.shape == (batch, 1)
    # bf16 weights/activations/output => a few 1e-3 of absolute error vs. the f32 reference.
    assert jnp.allclose(probs, ref_probs, atol=3e-2, rtol=3e-2)
    assert jnp.allclose(value, ref_value, atol=3e-2, rtol=3e-2)
    # Exact softmax division: rows sum to 1 up to bf16 output rounding.
    assert jnp.allclose(jnp.sum(probs, axis=-1), 1.0, atol=2e-2)

    print("KERNEL_OK")
</pallas_src>

<mosaic_0001>
module attributes {stable_mosaic.version = 11 : i64} {
  func.func @_fused_actor_critic_kernel(%arg0: i32, %arg1: memref<16x8xbf16, #tpu.memory_space<vmem>>, %arg2: memref<8x128xbf16, #tpu.memory_space<vmem>>, %arg3: memref<128x128xbf16, #tpu.memory_space<vmem>>, %arg4: memref<128x128xbf16, #tpu.memory_space<vmem>>, %arg5: memref<8x128xf32, #tpu.memory_space<vmem>>, %arg6: memref<16x128xbf16, #tpu.memory_space<vmem>>) attributes {dimension_semantics = [#tpu.dimension_semantics<parallel>], iteration_bounds = array<i64: 1>, scalar_prefetch = 0 : i64, scratch_operands = 0 : i64, tpu.core_type = #tpu.core_type<tc>, window_params = [{transform_indices = @transform_0, window_bounds = array<i64: 16, 8>}, {pipeline_mode = #tpu.pipeline_mode<synchronous>, transform_indices = @transform_1, window_bounds = array<i64: 8, 128>}, {pipeline_mode = #tpu.pipeline_mode<synchronous>, transform_indices = @transform_2, window_bounds = array<i64: 128, 128>}, {pipeline_mode = #tpu.pipeline_mode<synchronous>, transform_indices = @transform_3, window_bounds = array<i64: 128, 128>}, {pipeline_mode = #tpu.pipeline_mode<synchronous>, transform_indices = @transform_4, window_bounds = array<i64: 8, 128>}, {transform_indices = @transform_5, window_bounds = array<i64: 16, 128>}]} {
    %c0 = arith.constant 0 : index
    %c0_0 = arith.constant 0 : index
    %0 = vector.load %arg1[%c0, %c0_0] : memref<16x8xbf16, #tpu.memory_space<vmem>>, vector<16x8xbf16>
    %c0_1 = arith.constant 0 : index
    %c0_2 = arith.constant 0 : index
    %1 = vector.load %arg5[%c0_1, %c0_2] : memref<8x128xf32, #tpu.memory_space<vmem>>, vector<1x128xf32>
    %c1 = arith.constant 1 : index
    %c0_3 = arith.constant 0 : index
    %2 = vector.load %arg5[%c1, %c0_3] : memref<8x128xf32, #tpu.memory_space<vmem>>, vector<1x128xf32>
    %c2 = arith.constant 2 : index
    %c0_4 = arith.constant 0 : index
    %3 = vector.load %arg5[%c2, %c0_4] : memref<8x128xf32, #tpu.memory_space<vmem>>, vector<1x128xf32>
    %c3 = arith.constant 3 : index
    %c0_5 = arith.constant 0 : index
    %4 = vector.load %arg5[%c3, %c0_5] : memref<8x128xf32, #tpu.memory_space<vmem>>, vector<1x128xf32>
    %c4 = arith.constant 4 : index
    %c0_6 = arith.constant 0 : index
    %5 = vector.load %arg5[%c4, %c0_6] : memref<8x128xf32, #tpu.memory_space<vmem>>, vector<1x128xf32>
    %c0_7 = arith.constant 0 : index
    %c0_8 = arith.constant 0 : index
    %6 = vector.load %arg2[%c0_7, %c0_8] : memref<8x128xbf16, #tpu.memory_space<vmem>>, vector<8x128xbf16>
    %cst = arith.constant dense<0.000000e+00> : vector<16x128xf32>
    %7 = tpu.matmul %0, %6, %cst {dimension_numbers = #tpu.dot_dimension_numbers<[1], [0], [0], [1], [0, 0, 1, 1], [], []>} : vector<16x8xbf16>, vector<8x128xbf16>, vector<16x128xf32> -> vector<16x128xf32>
    %8 = vector.broadcast %1 : vector<1x128xf32> to vector<16x128xf32>
    %9 = arith.addf %7, %8 : vector<16x128xf32>
    %cst_9 = arith.constant 0.000000e+00 : f32
    %10 = vector.broadcast %cst_9 : f32 to vector<16x128xf32>
    %11 = arith.maximumf %9, %10 : vector<16x128xf32>
    %12 = arith.truncf %11 : vector<16x128xf32> to vector<16x128xbf16>
    %c0_10 = arith.constant 0 : index
    %c0_11 = arith.constant 0 : index
    %13 = vector.load %arg3[%c0_10, %c0_11] : memref<128x128xbf16, #tpu.memory_space<vmem>>, vector<128x128xbf16>
    %cst_12 = arith.constant dense<0.000000e+00> : vector<16x128xf32>
    %14 = tpu.matmul %12, %13, %cst_12 {dimension_numbers = #tpu.dot_dimension_numbers<[1], [0], [0], [1], [0, 0, 1, 1], [], []>} : vector<16x128xbf16>, vector<128x128xbf16>, vector<16x128xf32> -> vector<16x128xf32>
    %15 = vector.broadcast %2 : vector<1x128xf32> to vector<16x128xf32>
    %16 = arith.addf %14, %15 : vector<16x128xf32>
    %cst_13 = arith.constant 0.000000e+00 : f32
    %17 = vector.broadcast %cst_13 : f32 to vector<16x128xf32>
    %18 = arith.maximumf %16, %17 : vector<16x128xf32>
    %19 = arith.truncf %18 : vector<16x128xf32> to vector<16x128xbf16>
    %c0_14 = arith.constant 0 : index
    %c0_15 = arith.constant 0 : index
    %20 = vector.load %arg4[%c0_14, %c0_15] : memref<128x128xbf16, #tpu.memory_space<vmem>>, vector<128x128xbf16>
    %cst_16 = arith.constant dense<0.000000e+00> : vector<16x128xf32>
    %21 = tpu.matmul %19, %20, %cst_16 {dimension_numbers = #tpu.dot_dimension_numbers<[1], [0], [0], [1], [0, 0, 1, 1], [], []>} : vector<16x128xbf16>, vector<128x128xbf16>, vector<16x128xf32> -> vector<16x128xf32>
    %22 = vector.broadcast %3 : vector<1x128xf32> to vector<16x128xf32>
    %23 = arith.addf %21, %22 : vector<16x128xf32>
    %24 = vector.broadcast %4 : vector<1x128xf32> to vector<16x128xf32>
    %25 = arith.addf %23, %24 : vector<16x128xf32>
    %cst_17 = arith.constant dense<0xFF800000> : vector<16xf32>
    %26 = vector.multi_reduction <maximumf>, %25, %cst_17 [1] : vector<16x128xf32> to vector<16xf32>
    %27 = vector.shape_cast %26 : vector<16xf32> to vector<16x1xf32>
    %28 = vector.broadcast %27 : vector<16x1xf32> to vector<16x128xf32>
    %29 = arith.subf %25, %28 : vector<16x128xf32>
    %30 = math.exp %29 : vector<16x128xf32>
    %cst_18 = arith.constant dense<0.000000e+00> : vector<16xf32>
    %31 = vector.multi_reduction <add>, %30, %cst_18 [1] : vector<16x128xf32> to vector<16xf32>
    %32 = vector.shape_cast %31 : vector<16xf32> to vector<16x1xf32>
    %33 = vector.broadcast %32 : vector<16x1xf32> to vector<16x128xf32>
    %34 = arith.divf %30, %33 : vector<16x128xf32>
    %35 = vector.broadcast %5 : vector<1x128xf32> to vector<16x128xf32>
    %36 = arith.mulf %23, %35 : vector<16x128xf32>
    %37 = arith.addf %34, %36 : vector<16x128xf32>
    %38 = arith.truncf %37 : vector<16x128xf32> to vector<16x128xbf16>
    %c0_19 = arith.constant 0 : index
    %c0_20 = arith.constant 0 : index
    %39 = vector.load %arg6[%c0_19, %c0_20] : memref<16x128xbf16, #tpu.memory_space<vmem>>, vector<16x128xbf16>
    tpu.vector_store %arg6[%c0_19, %c0_20], %38 {strides = array<i32>} : memref<16x128xbf16, #tpu.memory_space<vmem>>, vector<16x128xbf16>,
    return
  }
  func.func @transform_0(%arg0: i32) -> (i32, i32) {
    %c0_i32 = arith.constant 0 : i32
    %c0_i32_0 = arith.constant 0 : i32
    return %arg0, %c0_i32 : i32, i32
  }
  func.func @transform_1(%arg0: i32) -> (i32, i32) {
    %c0_i32 = arith.constant 0 : i32
    %c0_i32_0 = arith.constant 0 : i32
    %c0_i32_1 = arith.constant 0 : i32
    return %c0_i32, %c0_i32_0 : i32, i32
  }
  func.func @transform_2(%arg0: i32) -> (i32, i32) {
    %c0_i32 = arith.constant 0 : i32
    %c0_i32_0 = arith.constant 0 : i32
    %c0_i32_1 = arith.constant 0 : i32
    return %c0_i32, %c0_i32_0 : i32, i32
  }
  func.func @transform_3(%arg0: i32) -> (i32, i32) {
    %c0_i32 = arith.constant 0 : i32
    %c0_i32_0 = arith.constant 0 : i32
    %c0_i32_1 = arith.constant 0 : i32
    return %c0_i32, %c0_i32_0 : i32, i32
  }
  func.func @transform_4(%arg0: i32) -> (i32, i32) {
    %c0_i32 = arith.constant 0 : i32
    %c0_i32_0 = arith.constant 0 : i32
    %c0_i32_1 = arith.constant 0 : i32
    return %c0_i32, %c0_i32_0 : i32, i32
  }
  func.func @transform_5(%arg0: i32) -> (i32, i32) {
    %c0_i32 = arith.constant 0 : i32
    %c0_i32_0 = arith.constant 0 : i32
    return %arg0, %c0_i32 : i32, i32
  }
}

</mosaic_0001>

<llo_original>
// kernel: actor_critic_forward_slab.1
$region0: #{actor_critic_forward_slab.1}
  #allocation0 [shape = 'u32[]', space=smem, size = 0x4, offset = 0x4, fixed_abs, tag = 'smem constant byte address 0x4 - core index']
  #allocation1 [shape = 'u32[144,128]{1,0:T(1,128)}', space=vmem, size = 0x12000, scoped, tag = 'internal scratch']
  %s0 = inlined_call_operand.vmem [shape: bf16[2,8], index: 0, kind: input, shape index: {}]
  %s1 = inlined_call_operand.hbm [shape: bf16[8,128], index: 1, kind: input, shape index: {}]
  %s2 = inlined_call_operand.hbm [shape: bf16[128,128], index: 2, kind: input, shape index: {}]
  %s3 = inlined_call_operand.hbm [shape: bf16[128,128], index: 3, kind: input, shape index: {}]
  %s4 = inlined_call_operand.vmem [shape: f32[8,128], index: 4, kind: input, shape index: {}]
  %s5 = inlined_call_operand.hbm [shape: bf16[2,128], index: 5, kind: output, shape index: {}]
  %s6 = sld [smem:[#allocation0]]
  $region42: #{actor_critic_forward_slab.1} parent=0
    _
  %s8 = ssub.s32 1, %s6
  %s9 = scalar_select 0, %s8, %s6
  $region1: #{actor_critic_forward_slab.1} parent=0
    #allocation2 [shape = 'u8[2048]{0}', space=vmem, size = 0x800, scoped, tag = 'input window, operand 1, single buffered']
    #allocation3 [shape = 's32[1]{0}', space=sflag, size = 0x4, scoped, tag = 'scoped memory for actor_critic_forward_slab.1']
    #allocation4 [shape = 's32[1]{0}', space=sflag, size = 0x4, scoped, tag = 'scoped memory for actor_critic_forward_slab.1']
    #allocation5 [shape = 'u8[32768]{0}', space=vmem, size = 0x8000, scoped, tag = 'input window, operand 2, single buffered']
    #allocation6 [shape = 's32[1]{0}', space=sflag, size = 0x4, scoped, tag = 'scoped memory for actor_critic_forward_slab.1']
    #allocation7 [shape = 'u8[32768]{0}', space=vmem, size = 0x8000, scoped, tag = 'input window, operand 3, single buffered']
    #allocation8 [shape = 'u8[4096]{0}', space=vmem, size = 0x1000, scoped, tag = 'output window, operand 0, single buffered']
    %10 = vsyncpa [#allocation3], 0
    %11 = vsyncpa [#allocation6], 0
    %12 = vsyncpa [#allocation4], 0
    // Predicated region
    $region2: #{actor_critic_forward_slab.1} parent=1 // pred_check
      _
    $region3: #{actor_critic_forward_slab.1} parent=1 // pred_check_branch
      %14 = sbr.rel (0) target = $region5
    $region4: #{actor_critic_forward_slab.1} parent=1 // pred_region
      _
    $region5: #{actor_critic_forward_slab.1} parent=1 // pred_fallthru
      _
    // Predicated region
    $region6: #{actor_critic_forward_slab.1} parent=1 // pred_check
      _
    $region7: #{actor_critic_forward_slab.1} parent=1 // pred_check_branch
      %16 = sbr.rel (0) target = $region9
    $region8: #{actor_critic_forward_slab.1} parent=1 // pred_region
      %s18 = ssub.s32 64, 64
      %19 = vsyncadd [#allocation3], %s18
      %s21 = sshll.u32 [#allocation2], 4
      %s22 = int_to_ptr.vmem [resolvable:$true] %s21
      %24 = dma.hbm_to_vmem [thread:$0]  %s1, 64, %s22, [#allocation3]
    $region9: #{actor_critic_forward_slab.1} parent=1 // pred_fallthru
      _
    // Predicated region
    $region10: #{actor_critic_forward_slab.1} parent=1 // pred_check
      _
    $region11: #{actor_critic_forward_slab.1} parent=1 // pred_check_branch
      %26 = sbr.rel (0) target = $region13
    $region12: #{actor_critic_forward_slab.1} parent=1 // pred_region
      %s28 = ssub.s32 1024, 1024
      %29 = vsyncadd [#allocation6], %s28
      %s30 = sshll.u32 [#allocation5], 4
      %s31 = int_to_ptr.vmem [resolvable:$true] %s30
      %36 = dma.hbm_to_vmem [thread:$0]  %s2, 1024, %s31, [#allocation6], 64, 64, 4
    $region13: #{actor_critic_forward_slab.1} parent=1 // pred_fallthru
      _
    // Predicated region
    $region14: #{actor_critic_forward_slab.1} parent=1 // pred_check
      _
    $region15: #{actor_critic_forward_slab.1} parent=1 // pred_check_branch
      %38 = sbr.rel (0) target = $region17
    $region16: #{actor_critic_forward_slab.1} parent=1 // pred_region
      %s40 = ssub.s32 1024, 1024
      %41 = vsyncadd [#allocation6], %s40
      %s42 = sshll.u32 [#allocation7], 4
      %s43 = int_to_ptr.vmem [resolvable:$true] %s42
      %48 = dma.hbm_to_vmem [thread:$0]  %s3, 1024, %s43, [#allocation6], 64, 64, 4
    $region17: #{actor_critic_forward_slab.1} parent=1 // pred_fallthru
      _
    // Predicated region
    $region18: #{actor_critic_forward_slab.1} parent=1 // pred_check
      _
    $region19: #{actor_critic_forward_slab.1} parent=1 // pred_check_branch
      %50 = sbr.rel (0) target = $region21
    $region20: #{actor_critic_forward_slab.1} parent=1 // pred_region
      _
    $region21: #{actor_critic_forward_slab.1} parent=1 // pred_fallthru
      _
    // Predicated region
    $region22: #{actor_critic_forward_slab.1} parent=1 // pred_check
      _
    $region23: #{actor_critic_forward_slab.1} parent=1 // pred_check_branch
      %52 = sbr.rel (0) target = $region25
    $region24: #{actor_critic_forward_slab.1} parent=1 // pred_region
      %53 = dma.done [#allocation3], 64
    $region25: #{actor_critic_forward_slab.1} parent=1 // pred_fallthru
      _
    // Predicated region
    $region26: #{actor_critic_forward_slab.1} parent=1 // pred_check
      _
    $region27: #{actor_critic_forward_slab.1} parent=1 // pred_check_branch
      %55 = sbr.rel (0) target = $region29
    $region28: #{actor_critic_forward_slab.1} parent=1 // pred_region
      %56 = dma.done [#allocation6], 1024
    $region29: #{actor_critic_forward_slab.1} parent=1 // pred_fallthru
      _
    // Predicated region
    $region30: #{actor_critic_forward_slab.1} parent=1 // pred_check
      _
    $region31: #{actor_critic_forward_slab.1} parent=1 // pred_check_branch
      %58 = sbr.rel (0) target = $region33
    $region32: #{actor_critic_forward_slab.1} parent=1 // pred_region
      %59 = dma.done [#allocation6], 1024
    $region33: #{actor_critic_forward_slab.1} parent=1 // pred_fallthru
      _
    %v61 = vld [vmem:[%s0] sm:$0x1]
    %v62 = vld [vmem:[%s0 + $0x1] sm:$0x1]
    %v63 = vld [vmem:[%s0 + $0x2] sm:$0x1]
    %v64 = vld [vmem:[%s0 + $0x3] sm:$0x1]
    %v65 = vld [vmem:[%s0 + $0x4] sm:$0x1]
    %v66 = vld [vmem:[%s0 + $0x5] sm:$0x1]
    %v67 = vld [vmem:[%s0 + $0x6] sm:$0x1]
    %v68 = vld [vmem:[%s0 + $0x7] sm:$0x1]
    %v69 = vld [vmem:[%s4] sm:$0x1]
    %v70 = vld [vmem:[%s4 + $0x1] sm:$0x1]
    %v71 = vld [vmem:[%s4 + $0x2] sm:$0x1]
    %v72 = vld [vmem:[%s4 + $0x3] sm:$0x1]
    %v73 = vld [vmem:[%s4 + $0x4] sm:$0x1]
    %v74 = vld [vmem:[#allocation2] sm:$0xf]
    %v75 = vlaneseq
    %v76 = vshrl.u32 %v75, 7
    %v77 = vsub.s32 0, %v76
    %v78 = vrot.slane %v69, %v77
    %v87 = vcombine.low %v61, %v62
    %v88 = vcombine.low %v63, %v64
    %v89 = vcombine.low %v65, %v66
    %v90 = vcombine.low %v67, %v68
    %v92 = vunpack.c.l.s4 1966171168
    %v93 = vunpack.c.0.s8 %v92
    %v94 = vlaneseq
    %v95 = vshrl.u32 %v94, 7
    %v96 = vsub.s32 %v93, %v95
    %v97 = vrot.slane %v87, %v96
    %v99 = vunpack.c.l.s4 1966171168
    %v100 = vunpack.c.0.s8 %v99
    %v101 = vlaneseq
    %v102 = vshrl.u32 %v101, 7
    %v103 = vsub.s32 %v100, %v102
    %v104 = vrot.slane %v88, %v103
    %v106 = vunpack.c.l.s4 1966171168
    %v107 = vunpack.c.0.s8 %v106
    %v108 = vlaneseq
    %v109 = vshrl.u32 %v108, 7
    %v110 = vsub.s32 %v107, %v109
    %v111 = vrot.slane %v89, %v110
    %v113 = vunpack.c.l.s4 1966171168
    %v114 = vunpack.c.0.s8 %v113
    %v115 = vlaneseq
    %v116 = vshrl.u32 %v115, 7
    %v117 = vsub.s32 %v114, %v116
    %v118 = vrot.slane %v90, %v117
    %v119 = vcombine.low %v97, %v104
    %v120 = vcombine.low %v111, %v118
    %v122 = vunpack.c.l.s4 1966171168
    %v123 = vunpack.c.0.s8 %v122
    %v124 = vlaneseq
    %v125 = vshrl.u32 %v124, 7
    %v126 = vsub.s32 %v123, %v125
    %v127 = vrot.slane %v119, %v126
    %v129 = vunpack.c.l.s4 1966171168
    %v130 = vunpack.c.0.s8 %v129
    %v131 = vlaneseq
    %v132 = vshrl.u32 %v131, 7
    %v133 = vsub.s32 %v130, %v132
    %v134 = vrot.slane %v120, %v133
    %v135 = vcombine.low %v127, %v134
    %vm136 = vcmask 64512
    %v138 = vsel %vm136, %v135, 0
    %vm140 = vcmask 1043456
    %v142 = vsel %vm140, %v74, 0
    %144 = vmatprep.subr.bf16.mxu0 0
    %145 = vmatpush1.bf16.msra.mxu0 0
    %146 = vmatprep.subr.bf16.mxu0 0
    %147 = vmatpush1.bf16.msra.mxu0 0
    %148 = vmatprep.subr.bf16.mxu0 0
    %149 = vmatpush1.bf16.msra.mxu0 0
    %150 = vmatprep.subr.bf16.mxu0 0
    %151 = vmatpush1.bf16.msra.mxu0 0
    %152 = vmatprep.subr.bf16.mxu0 0
    %153 = vmatpush1.bf16.msra.mxu0 0
    %154 = vmatprep.subr.bf16.mxu0 0
    %155 = vmatpush1.bf16.msra.mxu0 0
    %156 = vmatprep.subr.bf16.mxu0 0
    %157 = vmatpush1.bf16.msra.mxu0 0
    %158 = vmatprep.subr.bf16.mxu0 0
    %159 = vmatpush1.bf16.msra.mxu0 %v142
    %160 = vmatprep.subr.bf16.mxu0 0
    %161 = vmatpush2.bf16.msra.mxu0 0
    %162 = vmatprep.subr.bf16.mxu0 0
    %163 = vmatpush2.bf16.msra.mxu0 0
    %164 = vmatprep.subr.bf16.mxu0 0
    %165 = vmatpush2.bf16.msra.mxu0 0
    %166 = vmatprep.subr.bf16.mxu0 0
    %167 = vmatpush2.bf16.msra.mxu0 0
    %168 = vmatprep.subr.bf16.mxu0 0
    %169 = vmatpush2.bf16.msra.mxu0 0
    %170 = vmatprep.subr.bf16.mxu0 0
    %171 = vmatpush2.bf16.msra.mxu0 0
    %172 = vmatprep.subr.bf16.mxu0 0
    %173 = vmatpush2.bf16.msra.mxu0 0
    %174 = vmatprep.subr.bf16.mxu0 0
    %175 = vmatpush2.bf16.msra.mxu0 0
    %176 = vmatprep.mubr.bf16.mxu0 0
    %177 = vmatmul.mubr.bf16.gmra.mxu0 %v138
    %v178 = vpop.f32.mrf.mxu0
    %v179 = vadd.f32 %v78, %v178
    %v180 = vpop.f32.mrf.mxu0
    %v181 = vpop.f32.mrf.mxu0
    %v182 = vadd.f32 %v78, %v181
    %v183 = vpop.f32.mrf.mxu0
    %184 = vdwg.mxu0
    %v185 = vmax.f32 %v179, 0.0
    %v186 = vmax.f32 %v182, 0.0
    %v187 = vpack.c.bf16 %v186, %v185
    %v188 = vld [vmem:[#allocation5] sm:$0xf]
    %v189 = vld [vmem:[#allocation5 + $0x4] sm:$0xf]
    %v190 = vld [vmem:[#allocation5 + $0x8] sm:$0xf]
    %v191 = vld [vmem:[#allocation5 + $0xc] sm:$0xf]
    %v192 = vld [vmem:[#allocation5 + $0x10] sm:$0xf]
    %v193 = vld [vmem:[#allocation5 + $0x14] sm:$0xf]
    %v194 = vld [vmem:[#allocation5 + $0x18] sm:$0xf]
    %v195 = vld [vmem:[#allocation5 + $0x1c] sm:$0xf]
    %v196 = vld [vmem:[#allocation5 + $0x20] sm:$0xf]
    %v197 = vld [vmem:[#allocation5 + $0x24] sm:$0xf]
    %v198 = vld [vmem:[#allocation5 + $0x28] sm:$0xf]
    %v199 = vld [vmem:[#allocation5 + $0x2c] sm:$0xf]
    %v200 = vld [vmem:[#allocation5 + $0x30] sm:$0xf]
    %v201 = vld [vmem:[#allocation5 + $0x34] sm:$0xf]
    %v202 = vld [vmem:[#allocation5 + $0x38] sm:$0xf]
    %v203 = vld [vmem:[#allocation5 + $0x3c] sm:$0xf]
    %v204 = vlaneseq
    %v205 = vshrl.u32 %v204, 7
    %v206 = vsub.s32 0, %v205
    %v207 = vrot.slane %v70, %v206
    %v224 = vunpack.c.l.b16 %v188
    %v225 = vunpack.c.l.b16 %v189
    %v226 = vunpack.c.l.b16 %v190
    %v227 = vunpack.c.l.b16 %v191
    %v228 = vunpack.c.l.b16 %v192
    %v229 = vunpack.c.l.b16 %v193
    %v230 = vunpack.c.l.b16 %v194
    %v231 = vunpack.c.l.b16 %v195
    %v232 = vunpack.c.l.b16 %v196
    %v233 = vunpack.c.l.b16 %v197
    %v234 = vunpack.c.l.b16 %v198
    %v235 = vunpack.c.l.b16 %v199
    %v236 = vunpack.c.l.b16 %v200
    %v237 = vunpack.c.l.b16 %v201
    %v238 = vunpack.c.l.b16 %v202
    %v239 = vunpack.c.l.b16 %v203
    %v240 = vpack.c.b16 %v225, %v224
    %v241 = vpack.c.b16 %v227, %v226
    %v242 = vpack.c.b16 %v229, %v228
    %v243 = vpack.c.b16 %v231, %v230
    %v244 = vpack.c.b16 %v233, %v232
    %v245 = vpack.c.b16 %v235, %v234
    %v246 = vpack.c.b16 %v237, %v236
    %v247 = vpack.c.b16 %v239, %v238
    %256 = vmatprep.subr.bf16.mxu0 0
    %257 = vmatpush1.bf16.msra.mxu0 %v247
    %258 = vmatprep.subr.bf16.mxu0 0
    %259 = vmatpush1.bf16.msra.mxu0 %v246
    %260 = vmatprep.subr.bf16.mxu0 0
    %261 = vmatpush1.bf16.msra.mxu0 %v245
    %262 = vmatprep.subr.bf16.mxu0 0
    %263 = vmatpush1.bf16.msra.mxu0 %v244
    %264 = vmatprep.subr.bf16.mxu0 0
    %265 = vmatpush1.bf16.msra.mxu0 %v243
    %266 = vmatprep.subr.bf16.mxu0 0
    %267 = vmatpush1.bf16.msra.mxu0 %v242
    %268 = vmatprep.subr.bf16.mxu0 0
    %269 = vmatpush1.bf16.msra.mxu0 %v241
    %270 = vmatprep.subr.bf16.mxu0 0
    %271 = vmatpush1.bf16.msra.mxu0 %v240
    %272 = vmatprep.subr.bf16.mxu0 0
    %273 = vmatpush2.bf16.msra.mxu0 0
    %274 = vmatprep.subr.bf16.mxu0 0
    %275 = vmatpush2.bf16.msra.mxu0 0
    %276 = vmatprep.subr.bf16.mxu0 0
    %277 = vmatpush2.bf16.msra.mxu0 0
    %278 = vmatprep.subr.bf16.mxu0 0
    %279 = vmatpush2.bf16.msra.mxu0 0
    %280 = vmatprep.subr.bf16.mxu0 0
    %281 = vmatpush2.bf16.msra.mxu0 0
    %282 = vmatprep.subr.bf16.mxu0 0
    %283 = vmatpush2.bf16.msra.mxu0 0
    %284 = vmatprep.subr.bf16.mxu0 0
    %285 = vmatpush2.bf16.msra.mxu0 0
    %286 = vmatprep.subr.bf16.mxu0 0
    %287 = vmatpush2.bf16.msra.mxu0 0
    %288 = vmatprep.mubr.bf16.mxu0 0
    %289 = vmatmul.mubr.bf16.gmra.mxu0 %v187
    %v290 = vpop.f32.mrf.mxu0
    %v291 = vadd.f32 %v207, %v290
    %v292 = vpop.f32.mrf.mxu0
    %v293 = vpop.f32.mrf.mxu0
    %v294 = vadd.f32 %v207, %v293
    %v295 = vpop.f32.mrf.mxu0
    %296 = vdwg.mxu0
    %v297 = vmax.f32 %v291, 0.0
    %v298 = vmax.f32 %v294, 0.0
    %v299 = vpack.c.bf16 %v298, %v297
    %v300 = vld [vmem:[#allocation7] sm:$0xf]
    %v301 = vld [vmem:[#allocation7 + $0x4] sm:$0xf]
    %v302 = vld [vmem:[#allocation7 + $0x8] sm:$0xf]
    %v303 = vld [vmem:[#allocation7 + $0xc] sm:$0xf]
    %v304 = vld [vmem:[#allocation7 + $0x10] sm:$0xf]
    %v305 = vld [vmem:[#allocation7 + $0x14] sm:$0xf]
    %v306 = vld [vmem:[#allocation7 + $0x18] sm:$0xf]
    %v307 = vld [vmem:[#allocation7 + $0x1c] sm:$0xf]
    %v308 = vld [vmem:[#allocation7 + $0x20] sm:$0xf]
    %v309 = vld [vmem:[#allocation7 + $0x24] sm:$0xf]
    %v310 = vld [vmem:[#allocation7 + $0x28] sm:$0xf]
    %v311 = vld [vmem:[#allocation7 + $0x2c] sm:$0xf]
    %v312 = vld [vmem:[#allocation7 + $0x30] sm:$0xf]
    %v313 = vld [vmem:[#allocation7 + $0x34] sm:$0xf]
    %v314 = vld [vmem:[#allocation7 + $0x38] sm:$0xf]
    %v315 = vld [vmem:[#allocation7 + $0x3c] sm:$0xf]
    %v316 = vlaneseq
    %v317 = vshrl.u32 %v316, 7
    %v318 = vsub.s32 0, %v317
    %v319 = vrot.slane %v71, %v318
    %v336 = vunpack.c.l.b16 %v300
    %v337 = vunpack.c.l.b16 %v301
    %v338 = vunpack.c.l.b16 %v302
    %v339 = vunpack.c.l.b16 %v303
    %v340 = vunpack.c.l.b16 %v304
    %v341 = vunpack.c.l.b16 %v305
    %v342 = vunpack.c.l.b16 %v306
    %v343 = vunpack.c.l.b16 %v307
    %v344 = vunpack.c.l.b16 %v308
    %v345 = vunpack.c.l.b16 %v309
    %v346 = vunpack.c.l.b16 %v310
    %v347 = vunpack.c.l.b16 %v311
    %v348 = vunpack.c.l.b16 %v312
    %v349 = vunpack.c.l.b16 %v313
    %v350 = vunpack.c.l.b16 %v314
    %v351 = vunpack.c.l.b16 %v315
    %v352 = vpack.c.b16 %v337, %v336
    %v353 = vpack.c.b16 %v339, %v338
    %v354 = vpack.c.b16 %v341, %v340
    %v355 = vpack.c.b16 %v343, %v342
    %v356 = vpack.c.b16 %v345, %v344
    %v357 = vpack.c.b16 %v347, %v346
    %v358 = vpack.c.b16 %v349, %v348
    %v359 = vpack.c.b16 %v351, %v350
    %368 = vmatprep.subr.bf16.mxu0 0
    %369 = vmatpush1.bf16.msra.mxu0 %v359
    %370 = vmatprep.subr.bf16.mxu0 0
    %371 = vmatpush1.bf16.msra.mxu0 %v358
    %372 = vmatprep.subr.bf16.mxu0 0
    %373 = vmatpush1.bf16.msra.mxu0 %v357
    %374 = vmatprep.subr.bf16.mxu0 0
    %375 = vmatpush1.bf16.msra.mxu0 %v356
    %376 = vmatprep.subr.bf16.mxu0 0
    %377 = vmatpush1.bf16.msra.mxu0 %v355
    %378 = vmatprep.subr.bf16.mxu0 0
    %379 = vmatpush1.bf16.msra.mxu0 %v354
    %380 = vmatprep.subr.bf16.mxu0 0
    %381 = vmatpush1.bf16.msra.mxu0 %v353
    %382 = vmatprep.subr.bf16.mxu0 0
    %383 = vmatpush1.bf16.msra.mxu0 %v352
    %384 = vmatprep.subr.bf16.mxu0 0
    %385 = vmatpush2.bf16.msra.mxu0 0
    %386 = vmatprep.subr.bf16.mxu0 0
    %387 = vmatpush2.bf16.msra.mxu0 0
    %388 = vmatprep.subr.bf16.mxu0 0
    %389 = vmatpush2.bf16.msra.mxu0 0
    %390 = vmatprep.subr.bf16.mxu0 0
    %391 = vmatpush2.bf16.msra.mxu0 0
    %392 = vmatprep.subr.bf16.mxu0 0
    %393 = vmatpush2.bf16.msra.mxu0 0
    %394 = vmatprep.subr.bf16.mxu0 0
    %395 = vmatpush2.bf16.msra.mxu0 0
    %396 = vmatprep.subr.bf16.mxu0 0
    %397 = vmatpush2.bf16.msra.mxu0 0
    %398 = vmatprep.subr.bf16.mxu0 0
    %399 = vmatpush2.bf16.msra.mxu0 0
    %400 = vmatprep.mubr.bf16.mxu0 0
    %401 = vmatmul.mubr.bf16.gmra.mxu0 %v299
    %v402 = vpop.f32.mrf.mxu0
    %v403 = vadd.f32 %v319, %v402
    %v404 = vpop.f32.mrf.mxu0
    %v405 = vpop.f32.mrf.mxu0
    %v406 = vadd.f32 %v319, %v405
    %v407 = vpop.f32.mrf.mxu0
    %408 = vdwg.mxu0
    %v409 = vlaneseq
    %v410 = vshrl.u32 %v409, 7
    %v411 = vsub.s32 0, %v410
    %v412 = vrot.slane %v72, %v411
    %v413 = vadd.f32 %v403, %v412
    %v414 = vadd.f32 %v406, %v412
    %415 = vmax.xlane.f32.xlu0 %v413
    %v416 = vpop.xlane.xlu0 %415
    %417 = vmax.xlane.f32.xlu0 %v414
    %v418 = vpop.xlane.xlu0 %417
    %v419 = vsub.f32 %v413, %v416
    %v420 = vsub.f32 %v414, %v418
    %v421 = vmul.f32 %v419, 1.442695
    %v422 = vpow.pop %v421
    %v423 = vmul.f32 %v420, 1.442695
    %v424 = vpow.pop %v423
    %425 = vadd.xlane.f32.xlu0 %v422
    %v426 = vpop.xlane.xlu0 %425
    %427 = vadd.xlane.f32.xlu0 %v424
    %v428 = vpop.xlane.xlu0 %427
    %v429 = vrcp.pop %v426
    %v430 = vmul.f32 %v422, %v429
    %v431 = vrcp.pop %v428
    %v432 = vmul.f32 %v424, %v431
    %v433 = vlaneseq
    %v434 = vshrl.u32 %v433, 7
    %v435 = vsub.s32 0, %v434
    %v436 = vrot.slane %v73, %v435
    %v437 = vmul.f32 %v403, %v436
    %v438 = vmul.f32 %v406, %v436
    %v439 = vadd.f32 %v430, %v437
    %v440 = vadd.f32 %v432, %v438
    %v441 = vpack.c.bf16 %v440, %v439
    %v443 = vcombine.high %v441, %v441
    %v445 = vunpack.c.l.s4 1966171168
    %v446 = vunpack.c.0.s8 %v445
    %v447 = vlaneseq
    %v448 = vshrl.u32 %v447, 7
    %v449 = vsub.s32 %v446, %v448
    %v450 = vrot.slane %v441, %v449
    %v452 = vunpack.c.l.s4 1966171168
    %v453 = vunpack.c.0.s8 %v452
    %v454 = vlaneseq
    %v455 = vshrl.u32 %v454, 7
    %v456 = vsub.s32 %v453, %v455
    %v457 = vrot.slane %v443, %v456
    %v458 = vcombine.high %v450, %v450
    %v459 = vcombine.high %v457, %v457
    %v461 = vunpack.c.l.s4 1966171168
    %v462 = vunpack.c.0.s8 %v461
    %v463 = vlaneseq
    %v464 = vshrl.u32 %v463, 7
    %v465 = vsub.s32 %v462, %v464
    %v466 = vrot.slane %v450, %v465
    %v468 = vunpack.c.l.s4 1966171168
    %v469 = vunpack.c.0.s8 %v468
    %v470 = vlaneseq
    %v471 = vshrl.u32 %v470, 7
    %v472 = vsub.s32 %v469, %v471
    %v473 = vrot.slane %v457, %v472
    %v475 = vunpack.c.l.s4 1966171168
    %v476 = vunpack.c.0.s8 %v475
    %v477 = vlaneseq
    %v478 = vshrl.u32 %v477, 7
    %v479 = vsub.s32 %v476, %v478
    %v480 = vrot.slane %v458, %v479
    %v482 = vunpack.c.l.s4 1966171168
    %v483 = vunpack.c.0.s8 %v482
    %v484 = vlaneseq
    %v485 = vshrl.u32 %v484, 7
    %v486 = vsub.s32 %v483, %v485
    %v487 = vrot.slane %v459, %v486
    %v488 = vcombine.high %v466, %v466
    %v489 = vcombine.high %v473, %v473
    %v490 = vcombine.high %v480, %v480
    %v491 = vcombine.high %v487, %v487
    %500 = vst [vmem:[#allocation8] sm:$0x1] %v466
    %501 = vst [vmem:[#allocation8 + $0x1] sm:$0x1] %v480
    %502 = vst [vmem:[#allocation8 + $0x2] sm:$0x1] %v488
    %503 = vst [vmem:[#allocation8 + $0x3] sm:$0x1] %v490
    %504 = vst [vmem:[#allocation8 + $0x4] sm:$0x1] %v473
    %505 = vst [vmem:[#allocation8 + $0x5] sm:$0x1] %v487
    %506 = vst [vmem:[#allocation8 + $0x6] sm:$0x1] %v489
    %507 = vst [vmem:[#allocation8 + $0x7] sm:$0x1] %v491
    // Predicated region
    $region34: #{actor_critic_forward_slab.1} parent=1 // pred_check
      _
    $region35: #{actor_critic_forward_slab.1} parent=1 // pred_check_branch
      %509 = sbr.rel (0) target = $region37
    $region36: #{actor_critic_forward_slab.1} parent=1 // pred_region
      %s511 = ssub.s32 128, 16
      %512 = vsyncadd [#allocation4], %s511
      %s513 = sshll.u32 [#allocation8], 4
      %s514 = int_to_ptr.vmem [resolvable:$true] %s513
      %519 = dma.vmem_to_hbm [thread:$0]  %s514, 16, %s5, [#allocation4], 16, 16, 1
    $region37: #{actor_critic_forward_slab.1} parent=1 // pred_fallthru
      _
    // Predicated region
    $region38: #{actor_critic_forward_slab.1} parent=1 // pred_check
      _
    $region39: #{actor_critic_forward_slab.1} parent=1 // pred_check_branch
      %521 = sbr.rel (0) target = $region41
    $region40: #{actor_critic_forward_slab.1} parent=1 // pred_region
      %522 = dma.done [#allocation4], 128
    $region41: #{actor_critic_forward_slab.1} parent=1 // pred_fallthru
      _
    %523 = vsyncpa [#allocation3], 1
    %524 = vsyncpa [#allocation6], 1
    %525 = vsyncpa [#allocation4], 1

</llo_original>
